<compile_context>
chip_gen: v7x
topology: tpu7x:2x2x1
jax: 0.10.0
libtpu: 0.0.40
codegen_flags: <defaults>
</compile_context>

<pallas_src>
import functools

import jax
import jax.numpy as jnp
from jax.experimental import pallas as pl
from jax.experimental.pallas import tpu as pltpu

O_PAD = 128  # minimum lane-dense output width (one full lane tile)


def _round_up(x, m):
    return ((x + m - 1) // m) * m


def _mlp_kernel(x_ref, p_ref, o_ref, *, d, dp, lane):
    """One batch tile of: relu(x @ W1 + b1) @ W2 + b2 (lane-padded output)."""
    x = x_ref[...].astype(jnp.bfloat16)                      # (TB, D)

    w1 = p_ref[0:d, :]                                       # (D, LANE)  bf16
    w2 = p_ref[dp:dp + lane, :]                              # (LANE, LANE) bf16
    b1 = p_ref[dp + lane:dp + lane + 1, :].astype(jnp.float32)      # (1, LANE)
    b2 = p_ref[dp + lane + 1:dp + lane + 2, :].astype(jnp.float32)  # (1, LANE)

    # Layer 1: bf16 operands on the MXU, f32 accumulation; bias + ReLU in f32.
    h = jnp.dot(x, w1, preferred_element_type=jnp.float32)   # (TB, LANE) f32
    h = jnp.maximum(h + b1, 0.0)

    # Layer 2: bf16 operands again; b2 add and store stay f32.
    o = jnp.dot(h.astype(jnp.bfloat16), w2,
                preferred_element_type=jnp.float32) + b2     # (TB, LANE) f32
    o_ref[...] = o.astype(o_ref.dtype)


def pack_params(w1, b1, w2, b2):
    """Pack all weights+biases ONCE into a single bf16, lane-dense buffer.

    Layout (rows):
      [0, D)                      : W1 (D, LANE)    -- lanes >= H are zero
      [dp, dp + LANE)             : W2 (LANE, LANE) -- rows >= H / lanes >= O zero
      dp + LANE                   : b1
      dp + LANE + 1               : b2
    with dp = round_up(D, 16) and LANE = max(round_up(H, 128), 128).
    """
    D, H = w1.shape
    H2, O = w2.shape
    assert H2 == H and b1.shape == (1, H) and b2.shape == (1, O)
    lane = max(_round_up(H, 128), O_PAD)
    assert O <= lane

    dp = _round_up(D, 16)
    w1p = jnp.zeros((dp, lane), jnp.float32).at[:D, :H].set(w1)
    w2p = jnp.zeros((lane, lane), jnp.float32).at[:H, :O].set(w2)
    b1p = jnp.zeros((1, lane), jnp.float32).at[:, :H].set(b1)
    b2p = jnp.zeros((1, lane), jnp.float32).at[:, :O].set(b2)

    rows = dp + lane + 2
    pad = _round_up(rows, 16) - rows
    p = jnp.concatenate(
        [w1p, w2p, b1p, b2p, jnp.zeros((pad, lane), jnp.float32)], axis=0)
    return p.astype(jnp.bfloat16)


def _choose_tile(B):
    """Batch rows per grid step."""
    if B <= 512:
        return B                       # single step; tiny batches stay 1-step
    # Large batch: <= 2048 rows/step and >= 2 steps so v7x's 2 TCs both work.
    return min(2048, _round_up(-(-B // 2), 8))


@functools.partial(jax.jit, static_argnames=("out_dim",))
def forward_model(x, p, out_dim=2):
    """Pallas implementation of ForwardModel.forward: (B, D) -> (B, out_dim)."""
    B, D = x.shape
    rows, lane = p.shape
    dp = _round_up(D, 16)
    assert rows >= dp + lane + 2

    TB = _choose_tile(B)
    grid_b = pl.cdiv(B, TB)

    kernel = functools.partial(_mlp_kernel, d=D, dp=dp, lane=lane)

    out_pad = pl.pallas_call(
        kernel,
        out_shape=jax.ShapeDtypeStruct((B, lane), jnp.float32),
        grid=(grid_b,),
        in_specs=[
            pl.BlockSpec((TB, D), lambda i: (i, 0)),        # x batch tile
            pl.BlockSpec((rows, lane), lambda i: (0, 0)),   # packed params, resident
        ],
        out_specs=pl.BlockSpec((TB, lane), lambda i: (i, 0)),
        compiler_params=pltpu.CompilerParams(
            dimension_semantics=("parallel",),
        ),
    )(x, p)

    # Lane-dense (B, LANE) block inside the kernel; real output is cols :out_dim.
    return out_pad[:, :out_dim]


def init_params(key, input_shape, hidden_size=128, out_size=2):
    """Deterministic PyTorch-nn.Linear-style init (uniform +/- 1/sqrt(fan_in))."""
    k1, k2, k3, k4 = jax.random.split(key, 4)
    bound1 = 1.0 / jnp.sqrt(input_shape)
    bound2 = 1.0 / jnp.sqrt(hidden_size)
    w1 = jax.random.uniform(k1, (input_shape, hidden_size), jnp.float32,
                            minval=-bound1, maxval=bound1)
    b1 = jax.random.uniform(k2, (1, hidden_size), jnp.float32,
                            minval=-bound1, maxval=bound1)
    w2 = jax.random.uniform(k3, (hidden_size, out_size), jnp.float32,
                            minval=-bound2, maxval=bound2)
    b2 = jax.random.uniform(k4, (1, out_size), jnp.float32,
                            minval=-bound2, maxval=bound2)
    return w1, b1, w2, b2


if __name__ == "__main__":
    key = jax.random.PRNGKey(0)
    k_x, k_p = jax.random.split(key)

    B = 128          # matches ForwardModel.train batch_size; multiple of 8 sublanes
    INPUT = 32       # input_shape
    HIDDEN = 128     # hidden_size
    OUT = 2          # (mean, log_std)

    x = jax.random.normal(k_x, (B, INPUT), jnp.float32)
    w1, b1, w2, b2 = init_params(k_p, INPUT, HIDDEN, OUT)
    p = pack_params(w1, b1, w2, b2)   # packed + bf16-cast once, outside the hot loop

    out = forward_model(x, p, out_dim=OUT)
    out = jax.block_until_ready(out)
    assert out.shape == (B, OUT)

    # Reference with matching numerics (bf16 operands/params, f32 accumulation).
    b1r = b1.astype(jnp.bfloat16).astype(jnp.float32)
    b2r = b2.astype(jnp.bfloat16).astype(jnp.float32)
    h_ref = jnp.maximum(
        jnp.dot(x.astype(jnp.bfloat16), w1.astype(jnp.bfloat16),
                preferred_element_type=jnp.float32) + b1r, 0.0)
    ref_bf16 = jnp.dot(h_ref.astype(jnp.bfloat16), w2.astype(jnp.bfloat16),
                       preferred_element_type=jnp.float32) + b2r
    assert jnp.allclose(out, ref_bf16, atol=1e-2, rtol=1e-2)

    # Sanity check vs the full-f32 reference (only bf16 rounding differs).
    ref_f32 = jnp.maximum(x @ w1 + b1, 0.0) @ w2 + b2
    assert jnp.allclose(out, ref_f32, atol=5e-2, rtol=5e-2)

    print("KERNEL_OK")
</pallas_src>

<mosaic_0001>
module attributes {stable_mosaic.version = 11 : i64} {
  func.func @_mlp_kernel(%arg0: i32, %arg1: memref<128x32xf32, #tpu.memory_space<vmem>>, %arg2: memref<176x128xbf16, #tpu.memory_space<vmem>>, %arg3: memref<128x128xf32, #tpu.memory_space<vmem>>) attributes {dimension_semantics = [#tpu.dimension_semantics<parallel>], iteration_bounds = array<i64: 1>, scalar_prefetch = 0 : i64, scratch_operands = 0 : i64, tpu.core_type = #tpu.core_type<tc>, window_params = [{transform_indices = @transform_0, window_bounds = array<i64: 128, 32>}, {pipeline_mode = #tpu.pipeline_mode<synchronous>, transform_indices = @transform_1, window_bounds = array<i64: 176, 128>}, {transform_indices = @transform_2, window_bounds = array<i64: 128, 128>}]} {
    %c0 = arith.constant 0 : index
    %c0_0 = arith.constant 0 : index
    %0 = vector.load %arg1[%c0, %c0_0] : memref<128x32xf32, #tpu.memory_space<vmem>>, vector<128x32xf32>
    %1 = arith.truncf %0 : vector<128x32xf32> to vector<128x32xbf16>
    %c0_1 = arith.constant 0 : index
    %c0_2 = arith.constant 0 : index
    %2 = vector.load %arg2[%c0_1, %c0_2] : memref<176x128xbf16, #tpu.memory_space<vmem>>, vector<32x128xbf16>
    %c32 = arith.constant 32 : index
    %c0_3 = arith.constant 0 : index
    %3 = vector.load %arg2[%c32, %c0_3] : memref<176x128xbf16, #tpu.memory_space<vmem>>, vector<128x128xbf16>
    %c160 = arith.constant 160 : index
    %c0_4 = arith.constant 0 : index
    %4 = vector.load %arg2[%c160, %c0_4] : memref<176x128xbf16, #tpu.memory_space<vmem>>, vector<1x128xbf16>
    %5 = arith.extf %4 : vector<1x128xbf16> to vector<1x128xf32>
    %c161 = arith.constant 161 : index
    %c0_5 = arith.constant 0 : index
    %6 = vector.load %arg2[%c161, %c0_5] : memref<176x128xbf16, #tpu.memory_space<vmem>>, vector<1x128xbf16>
    %7 = arith.extf %6 : vector<1x128xbf16> to vector<1x128xf32>
    %cst = arith.constant dense<0.000000e+00> : vector<128x128xf32>
    %8 = tpu.matmul %1, %2, %cst {dimension_numbers = #tpu.dot_dimension_numbers<[1], [0], [0], [1], [0, 0, 1, 1], [], []>} : vector<128x32xbf16>, vector<32x128xbf16>, vector<128x128xf32> -> vector<128x128xf32>
    %9 = vector.broadcast %5 : vector<1x128xf32> to vector<128x128xf32>
    %10 = arith.addf %8, %9 : vector<128x128xf32>
    %cst_6 = arith.constant 0.000000e+00 : f32
    %11 = vector.broadcast %cst_6 : f32 to vector<128x128xf32>
    %12 = arith.maximumf %10, %11 : vector<128x128xf32>
    %13 = arith.truncf %12 : vector<128x128xf32> to vector<128x128xbf16>
    %cst_7 = arith.constant dense<0.000000e+00> : vector<128x128xf32>
    %14 = tpu.matmul %13, %3, %cst_7 {dimension_numbers = #tpu.dot_dimension_numbers<[1], [0], [0], [1], [0, 0, 1, 1], [], []>} : vector<128x128xbf16>, vector<128x128xbf16>, vector<128x128xf32> -> vector<128x128xf32>
    %15 = vector.broadcast %7 : vector<1x128xf32> to vector<128x128xf32>
    %16 = arith.addf %14, %15 : vector<128x128xf32>
    %c0_8 = arith.constant 0 : index
    %c0_9 = arith.constant 0 : index
    %17 = vector.load %arg3[%c0_8, %c0_9] : memref<128x128xf32, #tpu.memory_space<vmem>>, vector<128x128xf32>
    tpu.vector_store %arg3[%c0_8, %c0_9], %16 {strides = array<i32>} : memref<128x128xf32, #tpu.memory_space<vmem>>, vector<128x128xf32>,
    return
  }
  func.func @transform_0(%arg0: i32) -> (i32, i32) {
    %c0_i32 = arith.constant 0 : i32
    %c0_i32_0 = arith.constant 0 : i32
    return %arg0, %c0_i32 : i32, i32
  }
  func.func @transform_1(%arg0: i32) -> (i32, i32) {
    %c0_i32 = arith.constant 0 : i32
    %c0_i32_0 = arith.constant 0 : i32
    %c0_i32_1 = arith.constant 0 : i32
    return %c0_i32, %c0_i32_0 : i32, i32
  }
  func.func @transform_2(%arg0: i32) -> (i32, i32) {
    %c0_i32 = arith.constant 0 : i32
    %c0_i32_0 = arith.constant 0 : i32
    return %arg0, %c0_i32 : i32, i32
  }
}

</mosaic_0001>

<llo_original>
// kernel: forward_model.1
$region0: #{forward_model.1}
  #allocation0 [shape = 'u32[]', space=smem, size = 0x4, offset = 0x4, fixed_abs, tag = 'smem constant byte address 0x4 - core index']
  #allocation1 [shape = 'u32[144,128]{1,0:T(1,128)}', space=vmem, size = 0x12000, scoped, tag = 'internal scratch']
  %s0 = inlined_call_operand.vmem [shape: f32[128,32], index: 0, kind: input, shape index: {}]
  %s1 = inlined_call_operand.vmem [shape: bf16[176,128], index: 1, kind: input, shape index: {}]
  %s2 = inlined_call_operand.vmem [shape: f32[128,128], index: 2, kind: output, shape index: {}]
  %s3 = sld [smem:[#allocation0]]
  $region18: #{forward_model.1} parent=0
    _
  %s5 = ssub.s32 1, %s3
  %s6 = scalar_select 0, %s5, %s3
  // Predicated region
  $region2: #{forward_model.1} parent=0 // pred_check
    _
  $region3: #{forward_model.1} parent=0 // pred_check_branch
    %8 = sbr.rel (0) target = $region5
  $region4: #{forward_model.1} parent=0 // pred_region
    _
  $region5: #{forward_model.1} parent=0 // pred_fallthru
    _
  // Predicated region
  $region6: #{forward_model.1} parent=0 // pred_check
    _
  $region7: #{forward_model.1} parent=0 // pred_check_branch
    %10 = sbr.rel (0) target = $region9
  $region8: #{forward_model.1} parent=0 // pred_region
    _
  $region9: #{forward_model.1} parent=0 // pred_fallthru
    _
  %v12 = vld [vmem:[%s0] sm:$0xff]
  %v13 = vld [vmem:[%s0 + $0x8] sm:$0xff]
  %v14 = vld [vmem:[%s0 + $0x10] sm:$0xff]
  %v15 = vld [vmem:[%s0 + $0x18] sm:$0xff]
  %v16 = vld [vmem:[%s0 + $0x20] sm:$0xff]
  %v17 = vld [vmem:[%s0 + $0x28] sm:$0xff]
  %v18 = vld [vmem:[%s0 + $0x30] sm:$0xff]
  %v19 = vld [vmem:[%s0 + $0x38] sm:$0xff]
  %v20 = vld [vmem:[%s0 + $0x40] sm:$0xff]
  %v21 = vld [vmem:[%s0 + $0x48] sm:$0xff]
  %v22 = vld [vmem:[%s0 + $0x50] sm:$0xff]
  %v23 = vld [vmem:[%s0 + $0x58] sm:$0xff]
  %v24 = vld [vmem:[%s0 + $0x60] sm:$0xff]
  %v25 = vld [vmem:[%s0 + $0x68] sm:$0xff]
  %v26 = vld [vmem:[%s0 + $0x70] sm:$0xff]
  %v27 = vld [vmem:[%s0 + $0x78] sm:$0xff]
  %v28 = vpack.c.bf16 %v13, %v12
  %v29 = vpack.c.bf16 %v15, %v14
  %v30 = vpack.c.bf16 %v17, %v16
  %v31 = vpack.c.bf16 %v19, %v18
  %v32 = vpack.c.bf16 %v21, %v20
  %v33 = vpack.c.bf16 %v23, %v22
  %v34 = vpack.c.bf16 %v25, %v24
  %v35 = vpack.c.bf16 %v27, %v26
  %v36 = vld [vmem:[%s1] sm:$0xf]
  %v37 = vld [vmem:[%s1 + $0x4] sm:$0xf]
  %v38 = vld [vmem:[%s1 + $0x8] sm:$0xf]
  %v39 = vld [vmem:[%s1 + $0xc] sm:$0xf]
  %v40 = vld [vmem:[%s1 + $0x10] sm:$0xf]
  %v41 = vld [vmem:[%s1 + $0x14] sm:$0xf]
  %v42 = vld [vmem:[%s1 + $0x18] sm:$0xf]
  %v43 = vld [vmem:[%s1 + $0x1c] sm:$0xf]
  %v44 = vld [vmem:[%s1 + $0x20] sm:$0xf]
  %v45 = vld [vmem:[%s1 + $0x24] sm:$0xf]
  %v46 = vld [vmem:[%s1 + $0x28] sm:$0xf]
  %v47 = vld [vmem:[%s1 + $0x2c] sm:$0xf]
  %v48 = vld [vmem:[%s1 + $0x30] sm:$0xf]
  %v49 = vld [vmem:[%s1 + $0x34] sm:$0xf]
  %v50 = vld [vmem:[%s1 + $0x38] sm:$0xf]
  %v51 = vld [vmem:[%s1 + $0x3c] sm:$0xf]
  %v52 = vld [vmem:[%s1 + $0x40] sm:$0xf]
  %v53 = vld [vmem:[%s1 + $0x44] sm:$0xf]
  %v54 = vld [vmem:[%s1 + $0x48] sm:$0xf]
  %v55 = vld [vmem:[%s1 + $0x4c] sm:$0xf]
  %v56 = vld [vmem:[%s1 + $0x50] sm:$0x1]
  %v57 = vunpack.c.l.bf16 %v56
  %v58 = vlaneseq
  %v59 = vshrl.u32 %v58, 7
  %v60 = vsub.s32 0, %v59
  %v61 = vrot.slane %v57, %v60
  %v66 = vunpack.c.l.b16 %v36
  %v67 = vunpack.c.l.b16 %v37
  %v68 = vunpack.c.l.b16 %v38
  %v69 = vunpack.c.l.b16 %v39
  %v70 = vpack.c.b16 %v67, %v66
  %v71 = vpack.c.b16 %v69, %v68
  %vm74 = vcmask 261120
  %v76 = vsel %vm74, %v28, 0
  %v79 = vsel %vm74, %v29, 0
  %v82 = vsel %vm74, %v30, 0
  %v85 = vsel %vm74, %v31, 0
  %v88 = vsel %vm74, %v32, 0
  %v91 = vsel %vm74, %v33, 0
  %v94 = vsel %vm74, %v34, 0
  %v97 = vsel %vm74, %v35, 0
  %99 = vmatprep.subr.bf16.mxu0 0
  %100 = vmatpush1.bf16.msra.mxu0 %v70
  %101 = vmatprep.subr.bf16.mxu0 0
  %102 = vmatpush1.bf16.msra.mxu0 %v71
  %103 = vmatprep.subr.bf16.mxu0 0
  %104 = vmatpush1.bf16.msra.mxu0 0
  %105 = vmatprep.subr.bf16.mxu0 0
  %106 = vmatpush1.bf16.msra.mxu0 0
  %107 = vmatprep.subr.bf16.mxu0 0
  %108 = vmatpush1.bf16.msra.mxu0 0
  %109 = vmatprep.subr.bf16.mxu0 0
  %110 = vmatpush1.bf16.msra.mxu0 0
  %111 = vmatprep.subr.bf16.mxu0 0
  %112 = vmatpush1.bf16.msra.mxu0 0
  %113 = vmatprep.subr.bf16.mxu0 0
  %114 = vmatpush1.bf16.msra.mxu0 0
  %115 = vmatprep.subr.bf16.mxu0 0
  %116 = vmatpush1.bf16.msra.mxu0 0
  %117 = vmatprep.subr.bf16.mxu0 0
  %118 = vmatpush1.bf16.msra.mxu0 0
  %119 = vmatprep.subr.bf16.mxu0 0
  %120 = vmatpush1.bf16.msra.mxu0 0
  %121 = vmatprep.subr.bf16.mxu0 0
  %122 = vmatpush1.bf16.msra.mxu0 0
  %123 = vmatprep.subr.bf16.mxu0 0
  %124 = vmatpush1.bf16.msra.mxu0 0
  %125 = vmatprep.subr.bf16.mxu0 0
  %126 = vmatpush1.bf16.msra.mxu0 0
  %127 = vmatprep.subr.bf16.mxu0 0
  %128 = vmatpush1.bf16.msra.mxu0 0
  %129 = vmatprep.subr.bf16.mxu0 0
  %130 = vmatpush1.bf16.msra.mxu0 0
  %131 = vmatprep.mubr.bf16.mxu0 0
  %132 = vmatmul.mubr.bf16.gmra.mrb[0].mxu0 %v76
  %v133 = vpop.f32.mrb[0].mxu0
  %v134 = vadd.f32 %v61, %v133
  %v135 = vpop.f32.mrb[0].mxu0
  %v136 = vpop.f32.mrb[0].mxu0
  %v137 = vadd.f32 %v61, %v136
  %v138 = vpop.f32.mrb[0].mxu0
  %139 = vmatprep.mubr.bf16.mxu0 0
  %140 = vmatmul.mubr.bf16.gmra.mrb[0].mxu0 %v79
  %v141 = vpop.f32.mrb[0].mxu0
  %v142 = vadd.f32 %v61, %v141
  %v143 = vpop.f32.mrb[0].mxu0
  %v144 = vpop.f32.mrb[0].mxu0
  %v145 = vadd.f32 %v61, %v144
  %v146 = vpop.f32.mrb[0].mxu0
  %147 = vmatprep.mubr.bf16.mxu0 0
  %148 = vmatmul.mubr.bf16.gmra.mrb[0].mxu0 %v82
  %v149 = vpop.f32.mrb[0].mxu0
  %v150 = vadd.f32 %v61, %v149
  %v151 = vpop.f32.mrb[0].mxu0
  %v152 = vpop.f32.mrb[0].mxu0
  %v153 = vadd.f32 %v61, %v152
  %v154 = vpop.f32.mrb[0].mxu0
  %155 = vmatprep.mubr.bf16.mxu0 0
  %156 = vmatmul.mubr.bf16.gmra.mrb[0].mxu0 %v85
  %v157 = vpop.f32.mrb[0].mxu0
  %v158 = vadd.f32 %v61, %v157
  %v159 = vpop.f32.mrb[0].mxu0
  %v160 = vpop.f32.mrb[0].mxu0
  %v161 = vadd.f32 %v61, %v160
  %v162 = vpop.f32.mrb[0].mxu0
  %163 = vmatprep.mubr.bf16.mxu0 0
  %164 = vmatmul.mubr.bf16.gmra.mrb[0].mxu0 %v88
  %v165 = vpop.f32.mrb[0].mxu0
  %v166 = vadd.f32 %v61, %v165
  %v167 = vpop.f32.mrb[0].mxu0
  %v168 = vpop.f32.mrb[0].mxu0
  %v169 = vadd.f32 %v61, %v168
  %v170 = vpop.f32.mrb[0].mxu0
  %171 = vmatprep.mubr.bf16.mxu0 0
  %172 = vmatmul.mubr.bf16.gmra.mrb[0].mxu0 %v91
  %v173 = vpop.f32.mrb[0].mxu0
  %v174 = vadd.f32 %v61, %v173
  %v175 = vpop.f32.mrb[0].mxu0
  %v176 = vpop.f32.mrb[0].mxu0
  %v177 = vadd.f32 %v61, %v176
  %v178 = vpop.f32.mrb[0].mxu0
  %179 = vmatprep.mubr.bf16.mxu0 0
  %180 = vmatmul.mubr.bf16.gmra.mrb[0].mxu0 %v94
  %v181 = vpop.f32.mrb[0].mxu0
  %v182 = vadd.f32 %v61, %v181
  %v183 = vpop.f32.mrb[0].mxu0
  %v184 = vpop.f32.mrb[0].mxu0
  %v185 = vadd.f32 %v61, %v184
  %v186 = vpop.f32.mrb[0].mxu0
  %187 = vmatprep.mubr.bf16.mxu0 0
  %188 = vmatmul.mubr.bf16.gmra.mrb[0].mxu0 %v97
  %v189 = vpop.f32.mrb[0].mxu0
  %v190 = vadd.f32 %v61, %v189
  %v191 = vpop.f32.mrb[0].mxu0
  %v192 = vpop.f32.mrb[0].mxu0
  %v193 = vadd.f32 %v61, %v192
  %v194 = vpop.f32.mrb[0].mxu0
  %195 = vdwg.mxu0
  %v196 = vmax.f32 %v134, 0.0
  %v197 = vmax.f32 %v137, 0.0
  %v198 = vmax.f32 %v142, 0.0
  %v199 = vmax.f32 %v145, 0.0
  %v200 = vmax.f32 %v150, 0.0
  %v201 = vmax.f32 %v153, 0.0
  %v202 = vmax.f32 %v158, 0.0
  %v203 = vmax.f32 %v161, 0.0
  %v204 = vmax.f32 %v166, 0.0
  %v205 = vmax.f32 %v169, 0.0
  %v206 = vmax.f32 %v174, 0.0
  %v207 = vmax.f32 %v177, 0.0
  %v208 = vmax.f32 %v182, 0.0
  %v209 = vmax.f32 %v185, 0.0
  %v210 = vmax.f32 %v190, 0.0
  %v211 = vmax.f32 %v193, 0.0
  %v212 = vpack.c.bf16 %v197, %v196
  %v213 = vpack.c.bf16 %v199, %v198
  %v214 = vpack.c.bf16 %v201, %v200
  %v215 = vpack.c.bf16 %v203, %v202
  %v216 = vpack.c.bf16 %v205, %v204
  %v217 = vpack.c.bf16 %v207, %v206
  %v218 = vpack.c.bf16 %v209, %v208
  %v219 = vpack.c.bf16 %v211, %v210
  %v220 = vlaneseq
  %v221 = vshrl.u32 %v220, 7
  %v222 = vsub.s32 1, %v221
  %v223 = vrot.slane %v57, %v222
  %v240 = vunpack.c.l.b16 %v40
  %v241 = vunpack.c.l.b16 %v41
  %v242 = vunpack.c.l.b16 %v42
  %v243 = vunpack.c.l.b16 %v43
  %v244 = vunpack.c.l.b16 %v44
  %v245 = vunpack.c.l.b16 %v45
  %v246 = vunpack.c.l.b16 %v46
  %v247 = vunpack.c.l.b16 %v47
  %v248 = vunpack.c.l.b16 %v48
  %v249 = vunpack.c.l.b16 %v49
  %v250 = vunpack.c.l.b16 %v50
  %v251 = vunpack.c.l.b16 %v51
  %v252 = vunpack.c.l.b16 %v52
  %v253 = vunpack.c.l.b16 %v53
  %v254 = vunpack.c.l.b16 %v54
  %v255 = vunpack.c.l.b16 %v55
  %v256 = vpack.c.b16 %v241, %v240
  %v257 = vpack.c.b16 %v243, %v242
  %v258 = vpack.c.b16 %v245, %v244
  %v259 = vpack.c.b16 %v247, %v246
  %v260 = vpack.c.b16 %v249, %v248
  %v261 = vpack.c.b16 %v251, %v250
  %v262 = vpack.c.b16 %v253, %v252
  %v263 = vpack.c.b16 %v255, %v254
  %272 = vmatprep.subr.bf16.mxu0 0
  %273 = vmatpush1.bf16.msra.mxu0 %v256
  %274 = vmatprep.subr.bf16.mxu0 0
  %275 = vmatpush1.bf16.msra.mxu0 %v257
  %276 = vmatprep.subr.bf16.mxu0 0
  %277 = vmatpush1.bf16.msra.mxu0 %v258
  %278 = vmatprep.subr.bf16.mxu0 0
  %279 = vmatpush1.bf16.msra.mxu0 %v259
  %280 = vmatprep.subr.bf16.mxu0 0
  %281 = vmatpush1.bf16.msra.mxu0 %v260
  %282 = vmatprep.subr.bf16.mxu0 0
  %283 = vmatpush1.bf16.msra.mxu0 %v261
  %284 = vmatprep.subr.bf16.mxu0 0
  %285 = vmatpush1.bf16.msra.mxu0 %v262
  %286 = vmatprep.subr.bf16.mxu0 0
  %287 = vmatpush1.bf16.msra.mxu0 %v263
  %288 = vmatprep.subr.bf16.mxu0 0
  %289 = vmatpush1.bf16.msra.mxu0 0
  %290 = vmatprep.subr.bf16.mxu0 0
  %291 = vmatpush1.bf16.msra.mxu0 0
  %292 = vmatprep.subr.bf16.mxu0 0
  %293 = vmatpush1.bf16.msra.mxu0 0
  %294 = vmatprep.subr.bf16.mxu0 0
  %295 = vmatpush1.bf16.msra.mxu0 0
  %296 = vmatprep.subr.bf16.mxu0 0
  %297 = vmatpush1.bf16.msra.mxu0 0
  %298 = vmatprep.subr.bf16.mxu0 0
  %299 = vmatpush1.bf16.msra.mxu0 0
  %300 = vmatprep.subr.bf16.mxu0 0
  %301 = vmatpush1.bf16.msra.mxu0 0
  %302 = vmatprep.subr.bf16.mxu0 0
  %303 = vmatpush1.bf16.msra.mxu0 0
  %304 = vmatprep.mubr.bf16.mxu0 0
  %305 = vmatmul.mubr.bf16.gmra.mrb[0].mxu0 %v212
  %v306 = vpop.f32.mrb[0].mxu0
  %v307 = vadd.f32 %v223, %v306
  %v308 = vpop.f32.mrb[0].mxu0
  %v309 = vpop.f32.mrb[0].mxu0
  %v310 = vadd.f32 %v223, %v309
  %v311 = vpop.f32.mrb[0].mxu0
  %312 = vmatprep.mubr.bf16.mxu0 0
  %313 = vmatmul.mubr.bf16.gmra.mrb[0].mxu0 %v213
  %v314 = vpop.f32.mrb[0].mxu0
  %v315 = vadd.f32 %v223, %v314
  %v316 = vpop.f32.mrb[0].mxu0
  %v317 = vpop.f32.mrb[0].mxu0
  %v318 = vadd.f32 %v223, %v317
  %v319 = vpop.f32.mrb[0].mxu0
  %320 = vmatprep.mubr.bf16.mxu0 0
  %321 = vmatmul.mubr.bf16.gmra.mrb[0].mxu0 %v214
  %v322 = vpop.f32.mrb[0].mxu0
  %v323 = vadd.f32 %v223, %v322
  %v324 = vpop.f32.mrb[0].mxu0
  %v325 = vpop.f32.mrb[0].mxu0
  %v326 = vadd.f32 %v223, %v325
  %v327 = vpop.f32.mrb[0].mxu0
  %328 = vmatprep.mubr.bf16.mxu0 0
  %329 = vmatmul.mubr.bf16.gmra.mrb[0].mxu0 %v215
  %v330 = vpop.f32.mrb[0].mxu0
  %v331 = vadd.f32 %v223, %v330
  %v332 = vpop.f32.mrb[0].mxu0
  %v333 = vpop.f32.mrb[0].mxu0
  %v334 = vadd.f32 %v223, %v333
  %v335 = vpop.f32.mrb[0].mxu0
  %336 = vmatprep.mubr.bf16.mxu0 0
  %337 = vmatmul.mubr.bf16.gmra.mrb[0].mxu0 %v216
  %v338 = vpop.f32.mrb[0].mxu0
  %v339 = vadd.f32 %v223, %v338
  %v340 = vpop.f32.mrb[0].mxu0
  %v341 = vpop.f32.mrb[0].mxu0
  %v342 = vadd.f32 %v223, %v341
  %v343 = vpop.f32.mrb[0].mxu0
  %344 = vmatprep.mubr.bf16.mxu0 0
  %345 = vmatmul.mubr.bf16.gmra.mrb[0].mxu0 %v217
  %v346 = vpop.f32.mrb[0].mxu0
  %v347 = vadd.f32 %v223, %v346
  %v348 = vpop.f32.mrb[0].mxu0
  %v349 = vpop.f32.mrb[0].mxu0
  %v350 = vadd.f32 %v223, %v349
  %v351 = vpop.f32.mrb[0].mxu0
  %352 = vmatprep.mubr.bf16.mxu0 0
  %353 = vmatmul.mubr.bf16.gmra.mrb[0].mxu0 %v218
  %v354 = vpop.f32.mrb[0].mxu0
  %v355 = vadd.f32 %v223, %v354
  %v356 = vpop.f32.mrb[0].mxu0
  %v357 = vpop.f32.mrb[0].mxu0
  %v358 = vadd.f32 %v223, %v357
  %v359 = vpop.f32.mrb[0].mxu0
  %360 = vmatprep.mubr.bf16.mxu0 0
  %361 = vmatmul.mubr.bf16.gmra.mrb[0].mxu0 %v219
  %v362 = vpop.f32.mrb[0].mxu0
  %v363 = vadd.f32 %v223, %v362
  %v364 = vpop.f32.mrb[0].mxu0
  %v365 = vpop.f32.mrb[0].mxu0
  %v366 = vadd.f32 %v223, %v365
  %v367 = vpop.f32.mrb[0].mxu0
  %368 = vdwg.mxu0
  %369 = vst [vmem:[%s2] sm:$0xff] %v307
  %370 = vst [vmem:[%s2 + $0x8] sm:$0xff] %v310
  %371 = vst [vmem:[%s2 + $0x10] sm:$0xff] %v315
  %372 = vst [vmem:[%s2 + $0x18] sm:$0xff] %v318
  %373 = vst [vmem:[%s2 + $0x20] sm:$0xff] %v323
  %374 = vst [vmem:[%s2 + $0x28] sm:$0xff] %v326
  %375 = vst [vmem:[%s2 + $0x30] sm:$0xff] %v331
  %376 = vst [vmem:[%s2 + $0x38] sm:$0xff] %v334
  %377 = vst [vmem:[%s2 + $0x40] sm:$0xff] %v339
  %378 = vst [vmem:[%s2 + $0x48] sm:$0xff] %v342
  %379 = vst [vmem:[%s2 + $0x50] sm:$0xff] %v347
  %380 = vst [vmem:[%s2 + $0x58] sm:$0xff] %v350
  %381 = vst [vmem:[%s2 + $0x60] sm:$0xff] %v355
  %382 = vst [vmem:[%s2 + $0x68] sm:$0xff] %v358
  %383 = vst [vmem:[%s2 + $0x70] sm:$0xff] %v363
  %384 = vst [vmem:[%s2 + $0x78] sm:$0xff] %v366
  // Predicated region
  $region10: #{forward_model.1} parent=0 // pred_check
    _
  $region11: #{forward_model.1} parent=0 // pred_check_branch
    %386 = sbr.rel (0) target = $region13
  $region12: #{forward_model.1} parent=0 // pred_region
    _
  $region13: #{forward_model.1} parent=0 // pred_fallthru
    _
  // Predicated region
  $region14: #{forward_model.1} parent=0 // pred_check
    _
  $region15: #{forward_model.1} parent=0 // pred_check_branch
    %388 = sbr.rel (0) target = $region17
  $region16: #{forward_model.1} parent=0 // pred_region
    _
  $region17: #{forward_model.1} parent=0 // pred_fallthru
    _

</llo_original>
